<compile_context>
chip_gen: v5e
topology: v5e:2x2
jax: 0.10.0
libtpu: 0.0.40
codegen_flags: <defaults>
</compile_context>

<pallas_src>
import math

import jax
import jax.numpy as jnp
from jax.experimental import pallas as pl
from jax.experimental.pallas import tpu as pltpu


def make_positional_encoding(max_len: int, d_model: int, dtype=jnp.float32) -> jnp.ndarray:
    """Deterministic parameter setup (mirrors the PyTorch __init__).

    Build this ONCE in the model dtype (pass dtype=x.dtype) so the forward path never
    has to slice or cast it. Also handles odd d_model (the naive PyTorch slice-assign
    would shape-error there).
    """
    position = jnp.arange(max_len, dtype=jnp.float32)[:, None]                  # (max_len, 1)
    div_term = jnp.exp(
        jnp.arange(0, d_model, 2, dtype=jnp.float32) * (-(math.log(10000.0) / d_model))
    )                                                                           # (ceil(d/2),)
    angles = position * div_term                                                # (max_len, ceil(d/2))
    enc = jnp.zeros((max_len, d_model), dtype=jnp.float32)
    enc = enc.at[:, 0::2].set(jnp.sin(angles))
    enc = enc.at[:, 1::2].set(jnp.cos(angles[:, : d_model // 2]))
    return enc.astype(dtype)                                                    # (max_len, d_model)


def _pe_add_kernel(x_ref, enc_ref, o_ref):
    # x_ref / o_ref: (tB, tR, tC) tile; enc_ref: (tR, tC) tile broadcast over the batch tile.
    o_ref[...] = x_ref[...] + enc_ref[...][None]


def _generation_budget():
    """(per-buffer tile byte target, scoped-VMEM limit) chosen per TPU generation."""
    try:
        vmem_cap = pltpu.get_tpu_info().vmem_capacity_bytes
    except Exception:
        vmem_cap = None
    if vmem_cap is not None and vmem_cap <= 64 * 1024 * 1024:
        # v7x-class: 64 MiB per TensorCore -> keep tiles modest, leave compiler headroom.
        return 4 * 1024 * 1024, 48 * 1024 * 1024
    if vmem_cap is not None:
        # v5e / v6e: 128 MiB physical VMEM -> bigger tiles, fewer grid steps.
        return 6 * 1024 * 1024, 64 * 1024 * 1024
    # Unknown backend (e.g. interpret mode): conservative defaults.
    return 2 * 1024 * 1024, 32 * 1024 * 1024


def _round_up(x: int, m: int) -> int:
    return ((x + m - 1) // m) * m


def positional_embedding_forward(x, encoding, *, batch_tile=None, row_tile=None, col_tile=None):
    """x: (B, S, D); encoding: (max_len, D). Returns x + encoding[None, :S, :].

    The add runs in x.dtype (a bf16 model stays bf16 -> half the HBM bytes; the
    PyTorch module would instead promote to the fp32 buffer dtype).
    """
    B, S, D = x.shape
    max_len, d_model = encoding.shape
    if S > max_len:
        raise ValueError(f"sequence length {S} exceeds max_len {max_len}")
    if d_model != D:
        raise ValueError(f"d_model mismatch: x has {D}, encoding has {d_model}")
    if encoding.dtype != x.dtype:
        # Slow-path fallback only; prefer make_positional_encoding(..., dtype=x.dtype).
        encoding = encoding.astype(x.dtype)

    itemsize = jnp.dtype(x.dtype).itemsize
    target_bytes, vmem_limit = _generation_budget()

    lane_aligned = (D % 128 == 0) and (S >= 8)
    if lane_aligned:
        # (B, S, D) view: tile seq rows (sublane), keep D lane-dense.
        x_view, enc_view = x, encoding
        R, C = S, D
        row_mult, col_mult = 8, 128
        row_cap, col_cap = (S // 8) * 8, D
    else:
        C = S * D
        if C >= 128:
            # Flatten the (S, D) plane into the lane axis: contiguous reshapes (no copy,
            # no slice); the full encoding is passed and index_map picks the blocks.
            x_view = x.reshape(B, 1, C)
            enc_view = encoding.reshape(1, max_len * D)
            R = 1
            row_mult, col_mult = 1, 128
            row_cap, col_cap = 1, (C // 128) * 128
        else:
            # Micro shape: one full-extent block; slicing the tiny encoding is negligible.
            x_view = x.reshape(B, 1, C)
            enc_view = encoding[:S, :].reshape(1, C)
            R = 1
            row_mult, col_mult = 1, C
            row_cap, col_cap = 1, C

    def _fit(mult, cap, unit_bytes):
        t = (target_bytes // max(unit_bytes, 1)) // mult * mult
        return max(mult, min(t, cap))

    tC = col_tile if col_tile is not None else _fit(col_mult, col_cap, row_mult * itemsize)
    tR = row_tile if row_tile is not None else _fit(row_mult, row_cap, tC * itemsize)
    tB = batch_tile if batch_tile is not None else max(
        1, min(B, target_bytes // max(1, tR * tC * itemsize)))

    gR, gC, gB = pl.cdiv(R, tR), pl.cdiv(C, tC), pl.cdiv(B, tB)

    # v7x has 2 TensorCores: expose >= 2 parallel grid steps for non-trivial work.
    auto_tiles = batch_tile is None and row_tile is None and col_tile is None
    if auto_tiles and gR * gC * gB == 1 and B * S * D * itemsize >= (1 << 20):
        if B >= 2:
            tB = pl.cdiv(B, 2)
        elif R >= 2 * row_mult:
            tR = min(_round_up(pl.cdiv(R, 2), row_mult), row_cap)
        elif C >= 2 * col_mult:
            tC = min(_round_up(pl.cdiv(C, 2), col_mult), col_cap)
        gR, gC, gB = pl.cdiv(R, tR), pl.cdiv(C, tC), pl.cdiv(B, tB)

    cost = pl.CostEstimate(
        flops=B * S * D,
        transcendentals=0,
        bytes_accessed=(2 * B * S * D + S * D) * itemsize,
    )

    out = pl.pallas_call(
        _pe_add_kernel,
        out_shape=jax.ShapeDtypeStruct(x_view.shape, x.dtype),
        grid_spec=pltpu.PrefetchScalarGridSpec(
            num_scalar_prefetch=0,
            # Batch innermost: enc's block index is constant along it, so the encoding
            # tile is fetched once per plane tile, not once per (batch, tile) step.
            grid=(gR, gC, gB),
            in_specs=[
                pl.BlockSpec((tB, tR, tC), lambda r, c, b: (b, r, c)),
                pl.BlockSpec((tR, tC), lambda r, c, b: (r, c)),
            ],
            out_specs=pl.BlockSpec((tB, tR, tC), lambda r, c, b: (b, r, c)),
        ),
        compiler_params=pltpu.CompilerParams(
            dimension_semantics=("parallel", "parallel", "parallel"),
            vmem_limit_bytes=vmem_limit,
        ),
        cost_estimate=cost,
    )(x_view, enc_view)

    return out if lane_aligned else out.reshape(B, S, D)


if __name__ == "__main__":
    def check(B, S, D, max_len, **tiles):
        x = jax.random.normal(jax.random.PRNGKey(0), (B, S, D), dtype=jnp.float32)
        enc = make_positional_encoding(max_len, D, dtype=x.dtype)
        out = jax.block_until_ready(positional_embedding_forward(x, enc, **tiles))
        ref = x + enc[None, :S, :]
        assert out.shape == (B, S, D)
        assert jnp.allclose(out, ref, atol=1e-6, rtol=1e-6), (B, S, D, max_len, tiles)

    # Primary small shape consistent with the module's forward (B, S, d_model).
    check(2, 8, 32, 16)
    # Lane-aligned path: partial seq + partial batch blocks, enc reuse across batch steps.
    check(3, 50, 128, 64, row_tile=16, batch_tile=2)
    # Flattened lane-dense path with multiple column tiles and a masked partial block.
    check(2, 10, 24, 16, col_tile=128)
    # Micro-shape fallback (S*D < 128): single full-extent block.
    check(2, 2, 32, 16)

    print("KERNEL_OK")
</pallas_src>

<mosaic_0001>
module attributes {stable_mosaic.version = 11 : i64} {
  func.func @_pe_add_kernel(%arg0: i32, %arg1: i32, %arg2: i32, %arg3: memref<2x1x256xf32, #tpu.memory_space<vmem>>, %arg4: memref<1x256xf32, #tpu.memory_space<vmem>>, %arg5: memref<2x1x256xf32, #tpu.memory_space<vmem>>) attributes {dimension_semantics = [#tpu.dimension_semantics<parallel>, #tpu.dimension_semantics<parallel>, #tpu.dimension_semantics<parallel>], iteration_bounds = array<i64: 1, 1, 1>, scalar_prefetch = 0 : i64, scratch_operands = 0 : i64, tpu.core_type = #tpu.core_type<tc>, window_params = [{transform_indices = @transform_0, window_bounds = array<i64: 2, 1, 256>}, {transform_indices = @transform_1, window_bounds = array<i64: 1, 256>}, {transform_indices = @transform_2, window_bounds = array<i64: 2, 1, 256>}]} {
    %c0 = arith.constant 0 : index
    %c0_0 = arith.constant 0 : index
    %c0_1 = arith.constant 0 : index
    %0 = vector.load %arg3[%c0, %c0_0, %c0_1] : memref<2x1x256xf32, #tpu.memory_space<vmem>>, vector<2x1x256xf32>
    %c0_2 = arith.constant 0 : index
    %c0_3 = arith.constant 0 : index
    %1 = vector.load %arg4[%c0_2, %c0_3] : memref<1x256xf32, #tpu.memory_space<vmem>>, vector<1x256xf32>
    %2 = vector.shape_cast %1 : vector<1x256xf32> to vector<1x1x256xf32>
    %3 = vector.broadcast %2 : vector<1x1x256xf32> to vector<2x1x256xf32>
    %4 = arith.addf %0, %3 : vector<2x1x256xf32>
    %c0_4 = arith.constant 0 : index
    %c0_5 = arith.constant 0 : index
    %c0_6 = arith.constant 0 : index
    %5 = vector.load %arg5[%c0_4, %c0_5, %c0_6] : memref<2x1x256xf32, #tpu.memory_space<vmem>>, vector<2x1x256xf32>
    tpu.vector_store %arg5[%c0_4, %c0_5, %c0_6], %4 {strides = array<i32>} : memref<2x1x256xf32, #tpu.memory_space<vmem>>, vector<2x1x256xf32>,
    return
  }
  func.func @transform_0(%arg0: i32, %arg1: i32, %arg2: i32) -> (i32, i32, i32) {
    %c0_i32 = arith.constant 0 : i32
    return %arg2, %arg0, %arg1 : i32, i32, i32
  }
  func.func @transform_1(%arg0: i32, %arg1: i32, %arg2: i32) -> (i32, i32) {
    %c0_i32 = arith.constant 0 : i32
    return %arg0, %arg1 : i32, i32
  }
  func.func @transform_2(%arg0: i32, %arg1: i32, %arg2: i32) -> (i32, i32, i32) {
    %c0_i32 = arith.constant 0 : i32
    return %arg2, %arg0, %arg1 : i32, i32, i32
  }
}

</mosaic_0001>

<llo_original>
// kernel: tpu_custom_call.1
$region0: #{tpu_custom_call.1}
  #allocation0 [shape = 'u32[]', space=smem, size = 0x4, offset = 0x4, fixed_abs, tag = 'smem constant byte address 0x4 - core index']
  #allocation1 [shape = 'u32[72,128]{1,0:T(1,128)}', space=vmem, size = 0x9000, scoped, tag = 'internal scratch']
  %s0 = inlined_call_operand.hbm [shape: f32[2,1,256], index: 0, kind: input, shape index: {}]
  %s1 = inlined_call_operand.hbm [shape: f32[1,512], index: 1, kind: input, shape index: {}]
  %s2 = inlined_call_operand.hbm [shape: f32[2,1,256], index: 2, kind: output, shape index: {}]
  %s3 = sld [smem:[#allocation0]]
  $region26: #{tpu_custom_call.1} parent=0
    _
  %s5 = ssub.s32 1, %s3
  %s6 = scalar_select 0, %s5, %s3
  $region1: #{tpu_custom_call.1} parent=0
    #allocation2 [shape = 'u8[2048]{0}', space=vmem, size = 0x800, scoped, tag = 'input window, operand 0, single buffered']
    #allocation3 [shape = 's32[1]{0}', space=sflag, size = 0x4, scoped, tag = 'scoped memory for tpu_custom_call.1']
    #allocation4 [shape = 's32[1]{0}', space=sflag, size = 0x4, scoped, tag = 'scoped memory for tpu_custom_call.1']
    #allocation5 [shape = 'u8[1024]{0}', space=vmem, size = 0x400, scoped, tag = 'input window, operand 1, single buffered']
    #allocation6 [shape = 's32[1]{0}', space=sflag, size = 0x4, scoped, tag = 'scoped memory for tpu_custom_call.1']
    #allocation7 [shape = 'u8[2048]{0}', space=vmem, size = 0x800, scoped, tag = 'output window, operand 0, single buffered']
    %7 = vsyncpa [#allocation3], 0
    %8 = vsyncpa [#allocation6], 0
    %9 = vsyncpa [#allocation4], 0
    // Predicated region
    $region2: #{tpu_custom_call.1} parent=1 // pred_check
      _
    $region3: #{tpu_custom_call.1} parent=1 // pred_check_branch
      %11 = sbr.rel (0) target = $region5
    $region4: #{tpu_custom_call.1} parent=1 // pred_region
      %13 = vsyncadd [#allocation3], 0
      %s14 = sshll.u32 %s0, 4
      %s15 = int_to_ptr.hbm [resolvable:$true] %s14
      %s16 = sshll.u32 [#allocation2], 4
      %s17 = int_to_ptr.vmem [resolvable:$true] %s16
      %22 = dma.hbm_to_vmem [thread:$0]  %s15, 64, %s17, [#allocation3], 32, 32, 2
    $region5: #{tpu_custom_call.1} parent=1 // pred_fallthru
      _
    // Predicated region
    $region6: #{tpu_custom_call.1} parent=1 // pred_check
      _
    $region7: #{tpu_custom_call.1} parent=1 // pred_check_branch
      %24 = sbr.rel (0) target = $region9
    $region8: #{tpu_custom_call.1} parent=1 // pred_region
      %26 = vsyncadd [#allocation6], 0
      %s28 = sshll.u32 %s1, 4
      %s29 = int_to_ptr.hbm [resolvable:$true] %s28
      %s30 = sshll.u32 [#allocation5], 4
      %s31 = int_to_ptr.vmem [resolvable:$true] %s30
      %33 = dma.hbm_to_vmem [thread:$0]  %s29, 32, %s31, [#allocation6]
    $region9: #{tpu_custom_call.1} parent=1 // pred_fallthru
      _
    // Predicated region
    $region10: #{tpu_custom_call.1} parent=1 // pred_check
      _
    $region11: #{tpu_custom_call.1} parent=1 // pred_check_branch
      %35 = sbr.rel (0) target = $region13
    $region12: #{tpu_custom_call.1} parent=1 // pred_region
      %37 = dma.done [#allocation3], 64
    $region13: #{tpu_custom_call.1} parent=1 // pred_fallthru
      _
    // Predicated region
    $region14: #{tpu_custom_call.1} parent=1 // pred_check
      _
    $region15: #{tpu_custom_call.1} parent=1 // pred_check_branch
      %39 = sbr.rel (0) target = $region17
    $region16: #{tpu_custom_call.1} parent=1 // pred_region
      %41 = dma.done [#allocation6], 32
    $region17: #{tpu_custom_call.1} parent=1 // pred_fallthru
      _
    %v42 = vld [vmem:[#allocation2] sm:$0x3]
    %v43 = vld [vmem:[#allocation2 + $0x2] sm:$0x3]
    %v44 = vld [vmem:[#allocation5] sm:$0x3]
    %v45 = vadd.f32 %v42, %v44
    %v46 = vadd.f32 %v43, %v44
    %v47 = vlaneseq
    %vm48 = vcmp.ge.s32.totalorder %v47, 0
    %vm49 = vcmp.lt.s32.totalorder %v47, 256
    %vm50 = vmand %vm48, %vm49
    %51 = vst.msk [vmem:[#allocation7] sm:$0x3] %vm50, %v45
    %52 = vst.msk [vmem:[#allocation7 + $0x2] sm:$0x3] %vm50, %v46
    // Predicated region
    $region18: #{tpu_custom_call.1} parent=1 // pred_check
      _
    $region19: #{tpu_custom_call.1} parent=1 // pred_check_branch
      %54 = sbr.rel (0) target = $region21
    $region20: #{tpu_custom_call.1} parent=1 // pred_region
      %56 = vsyncadd [#allocation4], 0
      %s57 = sshll.u32 [#allocation7], 4
      %s58 = int_to_ptr.vmem [resolvable:$true] %s57
      %s59 = sshll.u32 %s2, 4
      %s60 = int_to_ptr.hbm [resolvable:$true] %s59
      %65 = dma.vmem_to_hbm [thread:$0]  %s58, 64, %s60, [#allocation4], 32, 32, 2
    $region21: #{tpu_custom_call.1} parent=1 // pred_fallthru
      _
    // Predicated region
    $region22: #{tpu_custom_call.1} parent=1 // pred_check
      _
    $region23: #{tpu_custom_call.1} parent=1 // pred_check_branch
      %67 = sbr.rel (0) target = $region25
    $region24: #{tpu_custom_call.1} parent=1 // pred_region
      %69 = dma.done [#allocation4], 64
    $region25: #{tpu_custom_call.1} parent=1 // pred_fallthru
      _
    %70 = vsyncpa [#allocation3], 1
    %71 = vsyncpa [#allocation6], 1
    %72 = vsyncpa [#allocation4], 1

</llo_original>
